<compile_context>
chip_gen: v7x
topology: tpu7x:2x2x1
jax: 0.10.0
libtpu: 0.0.40
codegen_flags: <defaults>
</compile_context>

<pallas_src>
import functools
import math

import jax
import jax.numpy as jnp
from jax.experimental import pallas as pl
from jax.experimental.pallas import tpu as pltpu
import numpy as np


def _posenc_kernel(scale_ref, base_ref, o_ref, *, tile_rows: int):
    """One (rows, W) tile: out[r, c] = sin((i*tile_rows + r) * scale[c] + base[c]).

    All per-lane index math (c // d_hid, c % d_hid, the cos phase) lives in the
    host-precomputed (1, W) rows `scale_ref` / `base_ref`; the kernel is just a
    row iota, one convert, one fma (broadcast from the (1, W) rows) and one sin.
    """
    i = pl.program_id(0)
    rows, w = o_ref.shape
    row = jax.lax.broadcasted_iota(jnp.int32, (rows, w), 0) + i * tile_rows
    angle = row.astype(jnp.float32) * scale_ref[...] + base_ref[...]
    o_ref[...] = jnp.sin(angle).astype(o_ref.dtype)


def positional_encoding_sine(x: jax.Array, d_hid: int) -> jax.Array:
    """Returns the (1, S, d_hid) sinusoidal positional encoding for x of shape (B, S, D)."""
    seq_len = int(x.shape[1])

    # --- lane packing: pos_per_row consecutive positions per row so the kernel
    # output width W = lcm(d_hid, 128) is a multiple of 128 (lane-dense stores).
    pos_per_row = 128 // math.gcd(d_hid, 128)
    if pos_per_row * d_hid > 16384:          # avoid absurdly wide rows (odd d_hid)
        pos_per_row = 1
    W = pos_per_row * d_hid
    s_rows = -(-seq_len // pos_per_row)      # ceil(seq_len / pos_per_row)

    # --- host-precomputed per-lane rows (float64 math, cast at the boundary).
    hid = np.arange(d_hid)
    inv_freq = np.power(10000.0, -(2.0 * (hid // 2)) / float(d_hid))
    phase = (hid % 2) * (math.pi / 2.0)      # cos(a) == sin(a + pi/2)
    lane = np.arange(W)
    hid_l = lane % d_hid
    pos_l = lane // d_hid
    scale_row = jnp.asarray((pos_per_row * inv_freq[hid_l])[None, :], jnp.float32)
    base_row = jnp.asarray((pos_l * inv_freq[hid_l] + phase[hid_l])[None, :],
                           jnp.float32)

    # --- tile size: big tiles amortize per-step overhead; 4 MiB per output
    # buffer keeps the double-buffered output inside v5e's 16 MiB scoped-VMEM
    # default (and trivially inside v6e/v7x).  When everything fits in one tile,
    # still split into >= 2 "parallel" steps so both v7x TensorCores get work.
    target_bytes = 4 * 1024 * 1024
    max_rows = max(8, (target_bytes // (W * 4)) // 8 * 8)   # multiple of 8
    if s_rows <= 8:
        tile_rows = s_rows                   # single block == full array extent
    else:
        half = -(-s_rows // 2)
        tile_rows = min(max_rows, ((half + 7) // 8) * 8)
    grid = (pl.cdiv(s_rows, tile_rows),)

    kernel = functools.partial(_posenc_kernel, tile_rows=tile_rows)

    table = pl.pallas_call(
        kernel,
        out_shape=jax.ShapeDtypeStruct((s_rows, W), jnp.float32),
        grid_spec=pltpu.PrefetchScalarGridSpec(
            num_scalar_prefetch=0,
            grid=grid,
            in_specs=[
                pl.BlockSpec((1, W), lambda i: (0, 0)),   # scale row
                pl.BlockSpec((1, W), lambda i: (0, 0)),   # base-angle row
            ],
            out_specs=pl.BlockSpec((tile_rows, W), lambda i: (i, 0)),
        ),
        compiler_params=pltpu.CompilerParams(
            dimension_semantics=("parallel",),   # shards steps across v7x's 2 TCs
        ),
    )(scale_row, base_row)

    # Row-major (s_rows, W) is bit-identical to row-major (s_rows*pos_per_row,
    # d_hid): free reshape, then drop padded positions past seq_len.
    full = table.reshape(s_rows * pos_per_row, d_hid)
    return full[:seq_len][None, :, :]


def _reference_table(n_position: int, d_hid: int) -> np.ndarray:
    """NumPy reference identical to the PyTorch module's buffer construction."""
    def get_position_angle_vec(position):
        return [
            position / np.power(10000, 2 * (hid_j // 2) / d_hid)
            for hid_j in range(d_hid)
        ]

    sinusoid_table = np.array(
        [get_position_angle_vec(pos_i) for pos_i in range(n_position)]
    )
    sinusoid_table[:, 0::2] = np.sin(sinusoid_table[:, 0::2])
    sinusoid_table[:, 1::2] = np.cos(sinusoid_table[:, 1::2])
    return sinusoid_table[None].astype(np.float32)


if __name__ == "__main__":
    key = jax.random.PRNGKey(0)

    # Primary check: small (B, S, D) consistent with the module; d_hid=32
    # exercises the packed (W=128) path.
    batch, seq, d_hid = 2, 8, 32
    x = jax.random.normal(key, (batch, seq, d_hid), dtype=jnp.float32)
    out = jax.block_until_ready(positional_encoding_sine(x, d_hid))
    assert out.shape == (1, seq, d_hid), out.shape
    assert out.dtype == jnp.float32
    ref = _reference_table(n_position=seq, d_hid=d_hid)[:, :seq]
    np.testing.assert_allclose(np.asarray(out), ref, rtol=1e-5, atol=1e-5)

    # Secondary check: d_hid not dividing 128 and seq not divisible by the
    # packing factor -> generalized gcd packing (W=384) + tail slicing.
    seq2, d_hid2 = 12, 48
    x2 = jax.random.normal(key, (batch, seq2, d_hid2), dtype=jnp.float32)
    out2 = jax.block_until_ready(positional_encoding_sine(x2, d_hid2))
    assert out2.shape == (1, seq2, d_hid2), out2.shape
    ref2 = _reference_table(n_position=seq2, d_hid=d_hid2)[:, :seq2]
    np.testing.assert_allclose(np.asarray(out2), ref2, rtol=1e-5, atol=1e-5)

    # Tertiary check: longer sequence -> multi-step grid (2 parallel steps,
    # partial final block).  Slightly looser tolerance: f32 angle at pos ~300.
    seq3, d_hid3 = 300, 64
    x3 = jax.random.normal(key, (batch, seq3, d_hid3), dtype=jnp.float32)
    out3 = jax.block_until_ready(positional_encoding_sine(x3, d_hid3))
    assert out3.shape == (1, seq3, d_hid3), out3.shape
    ref3 = _reference_table(n_position=seq3, d_hid=d_hid3)[:, :seq3]
    np.testing.assert_allclose(np.asarray(out3), ref3, rtol=1e-4, atol=5e-4)

    print("KERNEL_OK")
</pallas_src>

<mosaic_0001>
module attributes {stable_mosaic.version = 11 : i64} {
  func.func @_posenc_kernel(%arg0: i32, %arg1: memref<1x128xf32, #tpu.memory_space<vmem>>, %arg2: memref<1x128xf32, #tpu.memory_space<vmem>>, %arg3: memref<2x128xf32, #tpu.memory_space<vmem>>) attributes {dimension_semantics = [#tpu.dimension_semantics<parallel>], iteration_bounds = array<i64: 1>, scalar_prefetch = 0 : i64, scratch_operands = 0 : i64, tpu.core_type = #tpu.core_type<tc>, window_params = [{pipeline_mode = #tpu.pipeline_mode<synchronous>, transform_indices = @transform_0, window_bounds = array<i64: 1, 128>}, {pipeline_mode = #tpu.pipeline_mode<synchronous>, transform_indices = @transform_1, window_bounds = array<i64: 1, 128>}, {transform_indices = @transform_2, window_bounds = array<i64: 2, 128>}]} {
    %0 = tpu.iota {dimensions = array<i32: 0>} : vector<2x128xi32>
    %c2_i32 = arith.constant 2 : i32
    %1 = arith.muli %arg0, %c2_i32 : i32
    %2 = vector.broadcast %1 : i32 to vector<2x128xi32>
    %3 = arith.addi %0, %2 : vector<2x128xi32>
    %4 = arith.sitofp %3 : vector<2x128xi32> to vector<2x128xf32>
    %c0 = arith.constant 0 : index
    %c0_0 = arith.constant 0 : index
    %5 = vector.load %arg1[%c0, %c0_0] : memref<1x128xf32, #tpu.memory_space<vmem>>, vector<1x128xf32>
    %6 = vector.broadcast %5 : vector<1x128xf32> to vector<2x128xf32>
    %7 = arith.mulf %4, %6 : vector<2x128xf32>
    %c0_1 = arith.constant 0 : index
    %c0_2 = arith.constant 0 : index
    %8 = vector.load %arg2[%c0_1, %c0_2] : memref<1x128xf32, #tpu.memory_space<vmem>>, vector<1x128xf32>
    %9 = vector.broadcast %8 : vector<1x128xf32> to vector<2x128xf32>
    %10 = arith.addf %7, %9 : vector<2x128xf32>
    %11 = math.sin %10 : vector<2x128xf32>
    %c0_3 = arith.constant 0 : index
    %c0_4 = arith.constant 0 : index
    %12 = vector.load %arg3[%c0_3, %c0_4] : memref<2x128xf32, #tpu.memory_space<vmem>>, vector<2x128xf32>
    tpu.vector_store %arg3[%c0_3, %c0_4], %11 {strides = array<i32>} : memref<2x128xf32, #tpu.memory_space<vmem>>, vector<2x128xf32>,
    return
  }
  func.func @transform_0(%arg0: i32) -> (i32, i32) {
    %c0_i32 = arith.constant 0 : i32
    %c0_i32_0 = arith.constant 0 : i32
    %c0_i32_1 = arith.constant 0 : i32
    return %c0_i32, %c0_i32_0 : i32, i32
  }
  func.func @transform_1(%arg0: i32) -> (i32, i32) {
    %c0_i32 = arith.constant 0 : i32
    %c0_i32_0 = arith.constant 0 : i32
    %c0_i32_1 = arith.constant 0 : i32
    return %c0_i32, %c0_i32_0 : i32, i32
  }
  func.func @transform_2(%arg0: i32) -> (i32, i32) {
    %c0_i32 = arith.constant 0 : i32
    %c0_i32_0 = arith.constant 0 : i32
    return %arg0, %c0_i32 : i32, i32
  }
}

</mosaic_0001>

<llo_original>
// kernel: tpu_custom_call.1
$region0: #{tpu_custom_call.1}
  #allocation0 [shape = 'u32[]', space=smem, size = 0x4, offset = 0x4, fixed_abs, tag = 'smem constant byte address 0x4 - core index']
  #allocation1 [shape = 'u32[144,128]{1,0:T(1,128)}', space=vmem, size = 0x12000, scoped, tag = 'internal scratch']
  %s0 = inlined_call_operand.hbm [shape: f32[1,128], index: 0, kind: input, shape index: {}]
  %s1 = inlined_call_operand.vmem [shape: f32[1,128], index: 1, kind: input, shape index: {}]
  %s2 = inlined_call_operand.hbm [shape: f32[2,128], index: 2, kind: output, shape index: {}]
  %s3 = sld [smem:[#allocation0]]
  $region22: #{tpu_custom_call.1} parent=0
    _
  %s5 = ssub.s32 1, %s3
  %s6 = scalar_select 0, %s5, %s3
  $region1: #{tpu_custom_call.1} parent=0
    #allocation2 [shape = 'u8[512]{0}', space=vmem, size = 0x400, scoped, tag = 'input window, operand 0, single buffered']
    #allocation3 [shape = 's32[1]{0}', space=sflag, size = 0x4, scoped, tag = 'scoped memory for tpu_custom_call.1']
    #allocation4 [shape = 's32[1]{0}', space=sflag, size = 0x4, scoped, tag = 'scoped memory for tpu_custom_call.1']
    #allocation5 [shape = 'u8[1024]{0}', space=vmem, size = 0x400, scoped, tag = 'output window, operand 0, single buffered']
    %7 = vsyncpa [#allocation3], 0
    %8 = vsyncpa [#allocation4], 0
    // Predicated region
    $region2: #{tpu_custom_call.1} parent=1 // pred_check
      _
    $region3: #{tpu_custom_call.1} parent=1 // pred_check_branch
      %10 = sbr.rel (0) target = $region5
    $region4: #{tpu_custom_call.1} parent=1 // pred_region
      %s12 = ssub.s32 16, 16
      %13 = vsyncadd [#allocation3], %s12
      %s15 = sshll.u32 [#allocation2], 4
      %s16 = int_to_ptr.vmem [resolvable:$true] %s15
      %18 = dma.hbm_to_vmem [thread:$0]  %s0, 16, %s16, [#allocation3]
    $region5: #{tpu_custom_call.1} parent=1 // pred_fallthru
      _
    // Predicated region
    $region6: #{tpu_custom_call.1} parent=1 // pred_check
      _
    $region7: #{tpu_custom_call.1} parent=1 // pred_check_branch
      %20 = sbr.rel (0) target = $region9
    $region8: #{tpu_custom_call.1} parent=1 // pred_region
      _
    $region9: #{tpu_custom_call.1} parent=1 // pred_fallthru
      _
    // Predicated region
    $region10: #{tpu_custom_call.1} parent=1 // pred_check
      _
    $region11: #{tpu_custom_call.1} parent=1 // pred_check_branch
      %22 = sbr.rel (0) target = $region13
    $region12: #{tpu_custom_call.1} parent=1 // pred_region
      %23 = dma.done [#allocation3], 16
    $region13: #{tpu_custom_call.1} parent=1 // pred_fallthru
      _
    %v24 = vlaneseq
    %v25 = vshrl.u32 %v24, 7
    %s26 = smul.u32 0, 2
    %v27 = vstv %s26
    %v28 = vadd.s32 %v25, %v27
    %v29 = vcvt.s32.f32 %v28
    %v30 = vld [vmem:[#allocation2] sm:$0x1]
    %v32 = vlaneseq
    %v33 = vshrl.u32 %v32, 7
    %v34 = vsub.s32 0, %v33
    %v35 = vrot.slane %v30, %v34
    %v37 = vmul.f32 %v29, %v35
    %v38 = vld [vmem:[%s1] sm:$0x1]
    %v40 = vlaneseq
    %v41 = vshrl.u32 %v40, 7
    %v42 = vsub.s32 0, %v41
    %v43 = vrot.slane %v38, %v42
    %v45 = vadd.f32 %v37, %v43
    %v46 = vand.u32 2147483647, %v45
    %vm47 = vcmp.le.f32.partialorder %v46, 0.7853982
    %vm48 = vcmp.lt.s32.totalorder %v45, 0
    %v49 = vand.u32 %v45, 2139095040
    %v50 = vshrl.u32 %v49, 23
    %v51 = vsub.s32 %v50, 127
    %v52 = vand.u32 2147483647, %v45
    %v53 = vand.u32 %v52, 8388607
    %v54 = vor.u32 %v53, 8388608
    %v55 = vsub.s32 0, %v54
    %v56 = vadd.s32 %v51, 1
    %vm57 = vcmp.gt.s32.totalorder %v56, 0
    %v58 = vsel %vm57, %v56, 0
    %v59 = vshrl.u32 %v58, 5
    %v60 = vand.u32 %v58, 31
    %v61 = vsub.s32 32, %v60
    %v62 = vshrl.u32 683565275, %v61
    %v63 = vshll.u32 683565275, %v60
    %v64 = vshrl.u32 2475754826, %v61
    %v65 = vor.u32 %v63, %v64
    %v66 = vshll.u32 2475754826, %v60
    %v67 = vshrl.u32 2131351028, %v61
    %v68 = vor.u32 %v66, %v67
    %v69 = vshll.u32 2131351028, %v60
    %v70 = vshrl.u32 2102212464, %v61
    %v71 = vor.u32 %v69, %v70
    %v72 = vshll.u32 2102212464, %v60
    %v73 = vshrl.u32 920167782, %v61
    %v74 = vor.u32 %v72, %v73
    %v75 = vshll.u32 920167782, %v60
    %v76 = vshrl.u32 1326507024, %v61
    %v77 = vor.u32 %v75, %v76
    %vm78 = vcmp.lt.s32.totalorder %v59, 1
    %vm79 = vcmp.lt.s32.totalorder %v59, 2
    %vm80 = vcmp.lt.s32.totalorder %v59, 3
    %vm81 = vcmp.lt.s32.totalorder %v59, 4
    %v82 = vsel %vm78, %v62, %v65
    %v83 = vsel %vm81, %v71, 2102212464
    %v84 = vsel %vm80, %v68, %v83
    %v85 = vsel %vm79, %v82, %v84
    %v86 = vsel %vm78, %v65, %v68
    %v87 = vsel %vm81, %v74, 920167782
    %v88 = vsel %vm80, %v71, %v87
    %v89 = vsel %vm79, %v86, %v88
    %v90 = vsel %vm78, %v68, %v71
    %v91 = vsel %vm81, %v77, 1326507024
    %v92 = vsel %vm80, %v74, %v91
    %v93 = vsel %vm79, %v90, %v92
    %v94 = vshll.u32 %v54, 8
    %v95 = vmul.u32.u64.compose %v94, %v93
    %v96 = vextract.low.u32 %v95
    %v97 = vextract.high.u32 %v95
    %v98 = vmul.u32.u64.compose %v94, %v89
    %v99 = vextract.low.u32 %v98
    %v100 = vextract.high.u32 %v98
    %v101 = vmul.u32 %v94, %v85
    %v102 = vadd.s32 %v97, %v99
    %vm103 = vc.u32 %v97, %v99
    %v104 = vadd.s32 %v100, 1
    %v105 = vsel %vm103, %v104, %v100
    %v106 = vadd.s32 %v101, %v105
    %v107 = vadd.s32 %v106, 536870912
    %v108 = vshrl.u32 %v107, 30
    %v109 = vshll.u32 %v108, 30
    %v110 = vsub.s32 %v106, %v109
    %vm111 = vcmp.lt.s32.totalorder %v110, 0
    %v112 = vsub.s32 0, %v110
    %v113 = vsel %vm111, %v112, %v110
    %v114 = vclz %v113
    %v115 = vsub.s32 %v114, 2
    %vm116 = vcmp.gt.s32.totalorder 0, %v115
    %v117 = vsel %vm116, 0, %v115
    %v118 = vsub.s32 32, %v117
    %v119 = vshll.u32 %v110, %v117
    %v120 = vshrl.u32 %v102, %v118
    %v121 = vor.u32 %v119, %v120
    %v122 = vsub.s32 4294967266, %v117
    %v123 = vadd.s32 %v122, 127
    %v124 = vshll.u32 %v123, 23
    %v125 = vor.u32 4788187, %v124
    %v126 = vand.u32 2147483647, %v125
    %v128 = vcvt.s32.f32 %v121
    %v129 = vmul.f32 %v128, %v126
    %v130 = vxor.u32 %v129, 2147483648
    %v131 = vsel %vm48, %v130, %v129
    %v132 = vsub.s32 4, %v108
    %v133 = vsel %vm48, %v132, %v108
    %v134 = vsel %vm47, %v45, %v131
    %v135 = vsel %vm47, 0, %v133
    %v136 = vcosq.f32.pop %v134
    %v137 = vsinq.f32.pop %v134
    %vm138 = vweird.f32 %v45
    %v139 = vadd.s32 %v135, 3
    %v140 = vand.u32 %v139, 3
    %vm141 = vcmp.lt.s32.totalorder %v140, 2
    %vm142 = vcmp.eq.s32.totalorder %v140, 0
    %v143 = vxor.u32 %v137, 2147483648
    %v144 = vsel %vm142, %v136, %v143
    %vm145 = vcmp.eq.s32.totalorder %v140, 2
    %v146 = vxor.u32 %v136, 2147483648
    %v147 = vsel %vm145, %v146, %v137
    %v148 = vsel %vm141, %v144, %v147
    %v149 = vsel %vm138, nan, %v148
    %150 = vst [vmem:[#allocation5] sm:$0x3] %v149
    // Predicated region
    $region14: #{tpu_custom_call.1} parent=1 // pred_check
      _
    $region15: #{tpu_custom_call.1} parent=1 // pred_check_branch
      %152 = sbr.rel (0) target = $region17
    $region16: #{tpu_custom_call.1} parent=1 // pred_region
      %s154 = ssub.s32 32, 32
      %155 = vsyncadd [#allocation4], %s154
      %s157 = sshll.u32 [#allocation5], 4
      %s158 = int_to_ptr.vmem [resolvable:$true] %s157
      %160 = dma.vmem_to_hbm [thread:$0]  %s158, 32, %s2, [#allocation4]
    $region17: #{tpu_custom_call.1} parent=1 // pred_fallthru
      _
    // Predicated region
    $region18: #{tpu_custom_call.1} parent=1 // pred_check
      _
    $region19: #{tpu_custom_call.1} parent=1 // pred_check_branch
      %162 = sbr.rel (0) target = $region21
    $region20: #{tpu_custom_call.1} parent=1 // pred_region
      %163 = dma.done [#allocation4], 32
    $region21: #{tpu_custom_call.1} parent=1 // pred_fallthru
      _
    %164 = vsyncpa [#allocation3], 1
    %165 = vsyncpa [#allocation4], 1

</llo_original>
